<compile_context>
chip_gen: v7x
topology: tpu7x:2x2x1
jax: 0.10.0
libtpu: 0.0.40
codegen_flags: <defaults>
</compile_context>

<pallas_src>
import jax
import jax.numpy as jnp
from jax.experimental import pallas as pl
from jax.experimental.pallas import tpu as pltpu


def _round_up(x, m):
    return (x + m - 1) // m * m


# ---------------------------------------------------------------------------
# Pallas kernels
# ---------------------------------------------------------------------------
def _make_conv_kernel(wp2, cg, rout, cout):
    """ConvBlock kernel for one image: 4 shifted-row matmuls + bias + ReLU.

    x_ref: (1, Rin, Cg)   bf16  pixel-major space-to-depth input (zero padded)
    w_ref: (4*Cg, Cout)   bf16  weights, tap-major (dh, dw)
    b_ref: (1, Cout)      f32   bias
    o_ref: (1, Rout, Cout) f32  "candidate" output rows (valid rows extracted
                                 outside the kernel)
    """

    def kernel(x_ref, w_ref, b_ref, o_ref):
        x = x_ref[0]        # (Rin, Cg)  bf16
        w = w_ref[...]      # (4*Cg, Cout) bf16
        acc = jnp.zeros((rout, cout), jnp.float32)
        # 2x2 stride-1 conv over the space-to-depth layout == original
        # 4x4 stride-2 conv.  Each tap is a pure row-shifted matmul.
        for t, (dh, dw) in enumerate(((0, 0), (0, 1), (1, 0), (1, 1))):
            sh = dh * wp2 + dw
            xs = x[sh:sh + rout, :]               # (Rout, Cg)
            wt = w[t * cg:(t + 1) * cg, :]        # (Cg, Cout)
            acc = acc + jnp.dot(xs, wt, preferred_element_type=jnp.float32)
        y = jnp.maximum(acc + b_ref[...], 0.0)    # f32 epilogue (ReLU, leaky=False)
        o_ref[0] = y.astype(o_ref.dtype)

    return kernel


def _avgpool_kernel(x_ref, o_ref):
    # x_ref: (1, H*W, C) -> mean over the spatial (sublane) axis, C stays on lanes.
    o_ref[0] = jnp.mean(x_ref[0].astype(jnp.float32), axis=0,
                        keepdims=True).astype(o_ref.dtype)


# ---------------------------------------------------------------------------
# ConvBlock forward: conv (fused window assembly + Pallas matmul) + bias + ReLU
# ---------------------------------------------------------------------------
def conv_block(a_nhwc, w, b, stride, pad):
    """a_nhwc: (N,H,W,Cin); w: PyTorch (Cout,Cin,K,K); b: (Cout,)."""
    N, H, W, Cin = a_nhwc.shape
    Cout, _, K, _ = w.shape
    assert K == 4 and stride == 2 and pad == 1, "canonical ConvBlock config"
    assert H % 2 == 0 and W % 2 == 0

    Hp, Wp = H + 2 * pad, W + 2 * pad
    Hp2, Wp2 = Hp // 2, Wp // 2
    Ho, Wo = Hp2 - 1, Wp2 - 1
    Cg = 4 * Cin                             # channels after 2x2 space-to-depth
    Rout = _round_up(Ho * Wp2, 8)            # candidate output rows per image
    Rin = _round_up(Rout + Wp2 + 1, 8)       # input rows needed (padded)

    # --- plain-JAX prep (1x traffic, no im2col blow-up) ---
    xp = jnp.pad(a_nhwc, ((0, 0), (pad, pad), (pad, pad), (0, 0)))
    x_s2d = xp.reshape(N, Hp2, 2, Wp2, 2, Cin)
    x_s2d = x_s2d.transpose(0, 1, 3, 2, 4, 5).reshape(N, Hp2 * Wp2, Cg)
    x2 = jnp.pad(x_s2d, ((0, 0), (0, Rin - Hp2 * Wp2), (0, 0)))
    x2 = x2.astype(jnp.bfloat16)             # bf16 MXU operands (halves DMA bytes)

    # w[co, ci, kh, kw] with kh = 2*dh + ph, kw = 2*dw + pw
    wr = w.reshape(Cout, Cin, 2, 2, 2, 2)                       # (co,ci,dh,ph,dw,pw)
    w2 = jnp.transpose(wr, (2, 4, 3, 5, 1, 0)).reshape(4 * Cg, Cout)
    w2 = w2.astype(jnp.bfloat16)
    b2 = b.reshape(1, Cout).astype(jnp.float32)

    kernel = _make_conv_kernel(Wp2, Cg, Rout, Cout)
    cand = pl.pallas_call(
        kernel,
        out_shape=jax.ShapeDtypeStruct((N, Rout, Cout), jnp.float32),
        grid=(N,),
        in_specs=[
            pl.BlockSpec((1, Rin, Cg), lambda n: (n, 0, 0)),
            pl.BlockSpec((4 * Cg, Cout), lambda n: (0, 0)),
            pl.BlockSpec((1, Cout), lambda n: (0, 0)),
        ],
        out_specs=pl.BlockSpec((1, Rout, Cout), lambda n: (n, 0, 0)),
        compiler_params=pltpu.CompilerParams(
            dimension_semantics=("parallel",),
            vmem_limit_bytes=32 * 1024 * 1024,
        ),
    )(x2, w2, b2)

    # Keep only candidate rows whose (ho, wo) corner is a valid output position.
    out = cand[:, :Ho * Wp2, :].reshape(N, Ho, Wp2, Cout)[:, :, :Wo, :]
    return out                                # (N, Ho, Wo, Cout) NHWC f32


def avg_pool_full(a_nhwc):
    """nnF.avg_pool2d(x, x.size(2), 1, 0) equivalent -> NCHW (N, C, 1, 1)."""
    N, H, W, C = a_nhwc.shape
    x = a_nhwc.reshape(N, H * W, C)
    out = pl.pallas_call(
        _avgpool_kernel,
        out_shape=jax.ShapeDtypeStruct((N, 1, C), jnp.float32),
        grid=(N,),
        in_specs=[pl.BlockSpec((1, H * W, C), lambda n: (n, 0, 0))],
        out_specs=pl.BlockSpec((1, 1, C), lambda n: (n, 0, 0)),
        compiler_params=pltpu.CompilerParams(dimension_semantics=("parallel",)),
    )(x)
    return out.reshape(N, 1, 1, C).transpose(0, 3, 1, 2)


# ---------------------------------------------------------------------------
# Encoder
# ---------------------------------------------------------------------------
def make_encoder_params(key, nc, nf):
    """Deterministic PyTorch-default-style init (kaiming_uniform a=sqrt(5))."""
    cfg = [(nc, nf, 4, 2, 1), (nf, 2 * nf, 4, 2, 1), (2 * nf, 4 * nf, 4, 2, 1)]
    params = []
    for (cin, cout, k, s, p) in cfg:
        key, k1, k2 = jax.random.split(key, 3)
        fan_in = cin * k * k
        bound = 1.0 / float(fan_in) ** 0.5
        w = jax.random.uniform(k1, (cout, cin, k, k), jnp.float32, -bound, bound)
        b = jax.random.uniform(k2, (cout,), jnp.float32, -bound, bound)
        params.append((w, b, s, p))
    return params


def encoder_forward(x_nchw, params, pool_out=False):
    """Returns the list of per-layer activations (NCHW), like Encoder.forward."""
    h = jnp.transpose(x_nchw, (0, 2, 3, 1))          # single NCHW -> NHWC transpose
    acts_nhwc = []
    for (w, b, s, p) in params:
        h = conv_block(h, w, b, s, p)
        acts_nhwc.append(h)
    # NCHW only at the API boundary, once per returned activation.
    outs = [jnp.transpose(a, (0, 3, 1, 2)) for a in acts_nhwc]
    if pool_out:
        outs.append(avg_pool_full(h))
    return outs


def encoder_reference(x_nchw, params, pool_out=False):
    """Pure-JAX reference.  Operands cast to bf16 to match the kernel's MXU
    numerics (f32 accumulation, f32 bias/ReLU)."""
    acts = []
    h = x_nchw
    for (w, b, s, p) in params:
        y = jax.lax.conv_general_dilated(
            h.astype(jnp.bfloat16), w.astype(jnp.bfloat16), (s, s),
            [(p, p), (p, p)],
            dimension_numbers=('NCHW', 'OIHW', 'NCHW'),
            preferred_element_type=jnp.float32)
        h = jnp.maximum(y + b[None, :, None, None], 0.0)
        acts.append(h)
    if pool_out:
        acts.append(jnp.mean(h, axis=(2, 3), keepdims=True))
    return acts


if __name__ == "__main__":
    key = jax.random.PRNGKey(0)
    kx, kp = jax.random.split(key)

    # Small shapes consistent with the module: nc=3, nf=8, input_size=16
    nc, nf, input_size, batch = 3, 8, 16, 2
    x = jax.random.normal(kx, (batch, nc, input_size, input_size), jnp.float32)
    params = make_encoder_params(kp, nc, nf)

    pool_out = True  # exercise the avg-pool kernel as well
    outs = encoder_forward(x, params, pool_out=pool_out)
    outs = [jax.block_until_ready(o) for o in outs]

    refs = encoder_reference(x, params, pool_out=pool_out)
    for o, r in zip(outs, refs):
        assert o.shape == r.shape, (o.shape, r.shape)
        # bf16 matmul operands in both paths; f32 accumulation order may differ.
        assert jnp.allclose(o, r, atol=1e-2, rtol=1e-2), "mismatch vs reference"

    print("KERNEL_OK")
</pallas_src>

<mosaic_0001>
module attributes {stable_mosaic.version = 11 : i64} {
  func.func @kernel(%arg0: i32, %arg1: memref<1x88x12xbf16, #tpu.memory_space<vmem>>, %arg2: memref<48x8xbf16, #tpu.memory_space<vmem>>, %arg3: memref<1x8xf32, #tpu.memory_space<vmem>>, %arg4: memref<1x72x8xf32, #tpu.memory_space<vmem>>) attributes {dimension_semantics = [#tpu.dimension_semantics<parallel>], iteration_bounds = array<i64: 2>, scalar_prefetch = 0 : i64, scratch_operands = 0 : i64, tpu.core_type = #tpu.core_type<tc>, window_params = [{transform_indices = @transform_0, window_bounds = array<i64: 1, 88, 12>}, {pipeline_mode = #tpu.pipeline_mode<synchronous>, transform_indices = @transform_1, window_bounds = array<i64: 48, 8>}, {pipeline_mode = #tpu.pipeline_mode<synchronous>, transform_indices = @transform_2, window_bounds = array<i64: 1, 8>}, {transform_indices = @transform_3, window_bounds = array<i64: 1, 72, 8>}]} {
    %c0 = arith.constant 0 : index
    %c0_0 = arith.constant 0 : index
    %c0_1 = arith.constant 0 : index
    %0 = vector.load %arg1[%c0, %c0_0, %c0_1] : memref<1x88x12xbf16, #tpu.memory_space<vmem>>, vector<1x88x12xbf16>
    %1 = vector.shape_cast %0 : vector<1x88x12xbf16> to vector<88x12xbf16>
    %c0_2 = arith.constant 0 : index
    %c0_3 = arith.constant 0 : index
    %2 = vector.load %arg2[%c0_2, %c0_3] : memref<48x8xbf16, #tpu.memory_space<vmem>>, vector<48x8xbf16>
    %cst = arith.constant 0.000000e+00 : f32
    %3 = vector.broadcast %cst : f32 to vector<72x8xf32>
    %4 = vector.extract_strided_slice %1 {offsets = [0, 0], sizes = [72, 12], strides = [1, 1]} : vector<88x12xbf16> to vector<72x12xbf16>
    %5 = vector.extract_strided_slice %2 {offsets = [0, 0], sizes = [12, 8], strides = [1, 1]} : vector<48x8xbf16> to vector<12x8xbf16>
    %cst_4 = arith.constant dense<0.000000e+00> : vector<72x8xf32>
    %6 = tpu.matmul %4, %5, %cst_4 {dimension_numbers = #tpu.dot_dimension_numbers<[1], [0], [0], [1], [0, 0, 1, 1], [], []>} : vector<72x12xbf16>, vector<12x8xbf16>, vector<72x8xf32> -> vector<72x8xf32>
    %7 = arith.addf %3, %6 : vector<72x8xf32>
    %8 = vector.extract_strided_slice %1 {offsets = [1, 0], sizes = [72, 12], strides = [1, 1]} : vector<88x12xbf16> to vector<72x12xbf16>
    %9 = vector.extract_strided_slice %2 {offsets = [12, 0], sizes = [12, 8], strides = [1, 1]} : vector<48x8xbf16> to vector<12x8xbf16>
    %cst_5 = arith.constant dense<0.000000e+00> : vector<72x8xf32>
    %10 = tpu.matmul %8, %9, %cst_5 {dimension_numbers = #tpu.dot_dimension_numbers<[1], [0], [0], [1], [0, 0, 1, 1], [], []>} : vector<72x12xbf16>, vector<12x8xbf16>, vector<72x8xf32> -> vector<72x8xf32>
    %11 = arith.addf %7, %10 : vector<72x8xf32>
    %12 = vector.extract_strided_slice %1 {offsets = [9, 0], sizes = [72, 12], strides = [1, 1]} : vector<88x12xbf16> to vector<72x12xbf16>
    %13 = vector.extract_strided_slice %2 {offsets = [24, 0], sizes = [12, 8], strides = [1, 1]} : vector<48x8xbf16> to vector<12x8xbf16>
    %cst_6 = arith.constant dense<0.000000e+00> : vector<72x8xf32>
    %14 = tpu.matmul %12, %13, %cst_6 {dimension_numbers = #tpu.dot_dimension_numbers<[1], [0], [0], [1], [0, 0, 1, 1], [], []>} : vector<72x12xbf16>, vector<12x8xbf16>, vector<72x8xf32> -> vector<72x8xf32>
    %15 = arith.addf %11, %14 : vector<72x8xf32>
    %16 = vector.extract_strided_slice %1 {offsets = [10, 0], sizes = [72, 12], strides = [1, 1]} : vector<88x12xbf16> to vector<72x12xbf16>
    %17 = vector.extract_strided_slice %2 {offsets = [36, 0], sizes = [12, 8], strides = [1, 1]} : vector<48x8xbf16> to vector<12x8xbf16>
    %cst_7 = arith.constant dense<0.000000e+00> : vector<72x8xf32>
    %18 = tpu.matmul %16, %17, %cst_7 {dimension_numbers = #tpu.dot_dimension_numbers<[1], [0], [0], [1], [0, 0, 1, 1], [], []>} : vector<72x12xbf16>, vector<12x8xbf16>, vector<72x8xf32> -> vector<72x8xf32>
    %19 = arith.addf %15, %18 : vector<72x8xf32>
    %c0_8 = arith.constant 0 : index
    %c0_9 = arith.constant 0 : index
    %20 = vector.load %arg3[%c0_8, %c0_9] : memref<1x8xf32, #tpu.memory_space<vmem>>, vector<1x8xf32>
    %21 = vector.broadcast %20 : vector<1x8xf32> to vector<72x8xf32>
    %22 = arith.addf %19, %21 : vector<72x8xf32>
    %cst_10 = arith.constant 0.000000e+00 : f32
    %23 = vector.broadcast %cst_10 : f32 to vector<72x8xf32>
    %24 = arith.maximumf %22, %23 : vector<72x8xf32>
    %c0_11 = arith.constant 0 : index
    %c0_12 = arith.constant 0 : index
    %c0_13 = arith.constant 0 : index
    %25 = vector.load %arg4[%c0_11, %c0_12, %c0_13] : memref<1x72x8xf32, #tpu.memory_space<vmem>>, vector<1x72x8xf32>
    %26 = vector.shape_cast %25 : vector<1x72x8xf32> to vector<72x8xf32>
    %27 = vector.shape_cast %24 : vector<72x8xf32> to vector<1x72x8xf32>
    tpu.vector_store %arg4[%c0_11, %c0_12, %c0_13], %27 {strides = array<i32>} : memref<1x72x8xf32, #tpu.memory_space<vmem>>, vector<1x72x8xf32>,
    return
  }
  func.func @transform_0(%arg0: i32) -> (i32, i32, i32) {
    %c0_i32 = arith.constant 0 : i32
    %c0_i32_0 = arith.constant 0 : i32
    %c0_i32_1 = arith.constant 0 : i32
    return %arg0, %c0_i32, %c0_i32_0 : i32, i32, i32
  }
  func.func @transform_1(%arg0: i32) -> (i32, i32) {
    %c0_i32 = arith.constant 0 : i32
    %c0_i32_0 = arith.constant 0 : i32
    %c0_i32_1 = arith.constant 0 : i32
    return %c0_i32, %c0_i32_0 : i32, i32
  }
  func.func @transform_2(%arg0: i32) -> (i32, i32) {
    %c0_i32 = arith.constant 0 : i32
    %c0_i32_0 = arith.constant 0 : i32
    %c0_i32_1 = arith.constant 0 : i32
    return %c0_i32, %c0_i32_0 : i32, i32
  }
  func.func @transform_3(%arg0: i32) -> (i32, i32, i32) {
    %c0_i32 = arith.constant 0 : i32
    %c0_i32_0 = arith.constant 0 : i32
    %c0_i32_1 = arith.constant 0 : i32
    return %arg0, %c0_i32, %c0_i32_0 : i32, i32, i32
  }
}

</mosaic_0001>

<llo_original>
// kernel: tpu_custom_call.1
$region0: #{tpu_custom_call.1}
  #allocation0 [shape = 'u32[]', space=smem, size = 0x4, offset = 0x4, fixed_abs, tag = 'smem constant byte address 0x4 - core index']
  #allocation1 [shape = 'u32[144,128]{1,0:T(1,128)}', space=vmem, size = 0x12000, scoped, tag = 'internal scratch']
  %s0 = inlined_call_operand.vmem [shape: bf16[2,88,12], index: 0, kind: input, shape index: {}]
  %s1 = inlined_call_operand.vmem [shape: bf16[48,8], index: 1, kind: input, shape index: {}]
  %s2 = inlined_call_operand.vmem [shape: f32[1,8], index: 2, kind: input, shape index: {}]
  %s3 = inlined_call_operand.vmem [shape: f32[2,72,8], index: 3, kind: output, shape index: {}]
  %s4 = sld [smem:[#allocation0]]
  $region45: #{tpu_custom_call.1} parent=0
    _
  %s6 = ssub.s32 1, %s4
  %s7 = scalar_select 0, %s6, %s4
  loop: start=0, step=1, limit=4
  $region2: #{tpu_custom_call.1} parent=0 // loop_pre_header
    _
  $region3: #{tpu_custom_call.1} parent=0 // loop_header
    %s9 = sphi 0, %s13
    %p10 = scmp.ge.s32.totalorder %s9, 4
    %s19 = sphi 0, %s21
    %s22 = sphi 0, %s19
    %s23 = sphi 0, %s22
    %s39 = sphi 0, %s23
    %s43 = sphi 0, %s43
    %s45 = sphi 0, %s43
    %s46 = sphi 0, %s45
    %s60 = sphi 0, %s46
    %s64 = sphi 0, %s64
    %s66 = sphi 0, %s64
    %s67 = sphi 0, %s66
    %s81 = sphi 0, %s67
    %s87 = sphi 0, %s89
    %s90 = sphi 0, %s87
    %s91 = sphi 0, %s90
    %s107 = sphi 0, %s91
  $region4: #{tpu_custom_call.1} parent=0 // loop_header_branch
    %12 = sbr.rel (%p10) target = $region8
  $region5: #{tpu_custom_call.1} parent=0 // loop_body
    %s14 = ssub.s32 %s9, 1
    %s15 = ssub.s32 %s9, 2
    %s16 = sadd.s32 %s9, 1
    %s17 = ssub.s32 %s9, %s16
    %p18 = scmp.eq.s32.totalorder %s17, 0
    %s20 = sadd.s32 %s19, 1
    %s21 = scalar_select %p18, %s19, %s20
    %p24 = pneg %p18
    %p25 = scmp.eq.s32.totalorder %s9, 1
    %p26 = por %p24, %p25
    %p27 = scmp.ne.s32.totalorder %s19, %s22
    %p28 = scmp.eq.s32.totalorder %s9, 0
    %p29 = por %p27, %p28
    %p30 = scmp.ne.s32.totalorder %s19, %s22
    %p31 = scmp.eq.s32.totalorder %s14, 1
    %p32 = por %p30, %p31
    %p33 = scmp.ne.s32.totalorder %s22, %s23
    %p34 = scmp.eq.s32.totalorder %s14, 0
    %p35 = por %p33, %p34
    %p36 = scmp.ne.s32.totalorder %s22, %s23
    %p37 = scmp.eq.s32.totalorder %s15, 1
    %p38 = por %p36, %p37
    %p40 = scmp.ne.s32.totalorder %s23, %s39
    %p41 = scmp.eq.s32.totalorder %s15, 0
    %p42 = por %p40, %p41
    %s44 = sadd.s32 %s43, 1
    %p47 = scmp.eq.s32.totalorder %s9, 1
    %p48 = scmp.ne.s32.totalorder %s43, %s45
    %p49 = scmp.eq.s32.totalorder %s9, 0
    %p50 = por %p48, %p49
    %p51 = scmp.ne.s32.totalorder %s43, %s45
    %p52 = scmp.eq.s32.totalorder %s14, 1
    %p53 = por %p51, %p52
    %p54 = scmp.ne.s32.totalorder %s45, %s46
    %p55 = scmp.eq.s32.totalorder %s14, 0
    %p56 = por %p54, %p55
    %p57 = scmp.ne.s32.totalorder %s45, %s46
    %p58 = scmp.eq.s32.totalorder %s15, 1
    %p59 = por %p57, %p58
    %p61 = scmp.ne.s32.totalorder %s46, %s60
    %p62 = scmp.eq.s32.totalorder %s15, 0
    %p63 = por %p61, %p62
    %s65 = sadd.s32 %s64, 1
    %p68 = scmp.eq.s32.totalorder %s9, 1
    %p69 = scmp.ne.s32.totalorder %s64, %s66
    %p70 = scmp.eq.s32.totalorder %s9, 0
    %p71 = por %p69, %p70
    %p72 = scmp.ne.s32.totalorder %s64, %s66
    %p73 = scmp.eq.s32.totalorder %s14, 1
    %p74 = por %p72, %p73
    %p75 = scmp.ne.s32.totalorder %s66, %s67
    %p76 = scmp.eq.s32.totalorder %s14, 0
    %p77 = por %p75, %p76
    %p78 = scmp.ne.s32.totalorder %s66, %s67
    %p79 = scmp.eq.s32.totalorder %s15, 1
    %p80 = por %p78, %p79
    %p82 = scmp.ne.s32.totalorder %s67, %s81
    %p83 = scmp.eq.s32.totalorder %s15, 0
    %p84 = por %p82, %p83
    %s85 = ssub.s32 %s9, %s16
    %p86 = scmp.eq.s32.totalorder %s85, 0
    %s88 = sadd.s32 %s87, 1
    %s89 = scalar_select %p86, %s87, %s88
    %p92 = pneg %p86
    %p93 = scmp.eq.s32.totalorder %s9, 1
    %p94 = por %p92, %p93
    %p95 = scmp.ne.s32.totalorder %s87, %s90
    %p96 = scmp.eq.s32.totalorder %s9, 0
    %p97 = por %p95, %p96
    %p98 = scmp.ne.s32.totalorder %s87, %s90
    %p99 = scmp.eq.s32.totalorder %s14, 1
    %p100 = por %p98, %p99
    %p101 = scmp.ne.s32.totalorder %s90, %s91
    %p102 = scmp.eq.s32.totalorder %s14, 0
    %p103 = por %p101, %p102
    %p104 = scmp.ne.s32.totalorder %s90, %s91
    %p105 = scmp.eq.s32.totalorder %s15, 1
    %p106 = por %p104, %p105
    %p108 = scmp.ne.s32.totalorder %s91, %s107
    %p109 = scmp.eq.s32.totalorder %s15, 0
    %p110 = por %p108, %p109
    %p111 = scmp.le.s32.totalorder 1, %s9
    %p112 = scmp.lt.s32.totalorder %s9, 3
    %p113 = pnand %p111, %p112
    %p114 = pneg %p113
    // Predicated region
    $region9: #{tpu_custom_call.1} parent=5 // pred_check
      _
    $region10: #{tpu_custom_call.1} parent=5 // pred_check_branch
      %116 = sbr.rel (%p113) target = $region12
    $region11: #{tpu_custom_call.1} parent=5 // pred_region
      %s117 = ssub.s32 %s9, 1
      // Predicated region
      $region13: #{tpu_custom_call.1} parent=11 // pred_check
        %p118 = pneg %p56
      $region14: #{tpu_custom_call.1} parent=11 // pred_check_branch
        %120 = sbr.rel (%p118) target = $region16
      $region15: #{tpu_custom_call.1} parent=11 // pred_region
        _
      $region16: #{tpu_custom_call.1} parent=11 // pred_fallthru
        _
      // Predicated region
      $region17: #{tpu_custom_call.1} parent=11 // pred_check
        %p121 = pneg %p77
      $region18: #{tpu_custom_call.1} parent=11 // pred_check_branch
        %123 = sbr.rel (%p121) target = $region20
      $region19: #{tpu_custom_call.1} parent=11 // pred_region
        _
      $region20: #{tpu_custom_call.1} parent=11 // pred_fallthru
        _
    $region12: #{tpu_custom_call.1} parent=5 // pred_fallthru
      _
    %p124 = scmp.lt.s32.totalorder %s9, 2
    // Predicated region
    $region21: #{tpu_custom_call.1} parent=5 // pred_check
      %p125 = pneg %p124
    $region22: #{tpu_custom_call.1} parent=5 // pred_check_branch
      %127 = sbr.rel (%p125) target = $region24
    $region23: #{tpu_custom_call.1} parent=5 // pred_region
      // Predicated region
      $region25: #{tpu_custom_call.1} parent=23 // pred_check
        %p128 = pneg %p29
      $region26: #{tpu_custom_call.1} parent=23 // pred_check_branch
        %130 = sbr.rel (%p128) target = $region28
      $region27: #{tpu_custom_call.1} parent=23 // pred_region
        %p131 = scmp.lt.s32.totalorder %s9, 1
        %s132 = scalar_select %p131, %s9, 1
        %s133 = smul.addr %s132, 11
        %s134 = smul.addr %s133, 4
        %s135 = scalar_lea.vmem %s0, %s134
      $region28: #{tpu_custom_call.1} parent=23 // pred_fallthru
        _
    $region24: #{tpu_custom_call.1} parent=5 // pred_fallthru
      _
    %p136 = scmp.le.s32.totalorder 1, %s9
    %p137 = scmp.lt.s32.totalorder %s9, 3
    %p138 = pnand %p136, %p137
    %p139 = pneg %p138
    // Predicated region
    $region29: #{tpu_custom_call.1} parent=5 // pred_check
      _
    $region30: #{tpu_custom_call.1} parent=5 // pred_check_branch
      %141 = sbr.rel (%p138) target = $region32
    $region31: #{tpu_custom_call.1} parent=5 // pred_region
      %s142 = ssub.s32 %s9, 1
      %p143 = scmp.lt.s32.totalorder %s14, 1
      %s144 = scalar_select %p143, %s14, 1
      %s145 = smul.addr %s144, 11
      %s146 = smul.addr %s145, 4
      %s147 = scalar_lea.vmem %s0, %s146
      %p148 = pneg %p35
      %p149 = pneg %p32
      %p150 = pneg %p56
      %p151 = pneg %p53
      %p152 = pneg %p77
      %p153 = pneg %p74
      %p154 = pneg %p103
      %p155 = pneg %p100
      %p156 = scmp.lt.s32.totalorder %s14, 1
      %s157 = scalar_select %p156, %s14, 1
      %s158 = smul.addr %s157, 9
      %s159 = smul.addr %s158, 8
      %s160 = scalar_lea.vmem %s3, %s159
      %p161 = scmp.lt.s32.totalorder %s14, 1
      %s162 = scalar_select %p161, %s14, 1
      %s163 = smul.addr %s162, 11
      %s164 = smul.addr %s163, 4
      %s165 = scalar_lea.vmem %s0, %s164
      %p166 = scmp.lt.s32.totalorder %s14, 1
      %s167 = scalar_select %p166, %s14, 1
      %s168 = smul.addr %s167, 9
      %s169 = smul.addr %s168, 8
      %s170 = scalar_lea.vmem %s3, %s169
      %v172 = vld [vmem:[%s165] sm:$0xf]
      %v173 = vld [vmem:[%s165 + $0x4] sm:$0xf]
      %v174 = vld [vmem:[%s165 + $0x8] sm:$0xf]
      %v175 = vld [vmem:[%s165 + $0xc] sm:$0xf]
      %v176 = vld [vmem:[%s165 + $0x10] sm:$0xf]
      %v177 = vld [vmem:[%s165 + $0x14] sm:$0xf]
      %v178 = vld [vmem:[%s165 + $0x18] sm:$0xf]
      %v179 = vld [vmem:[%s165 + $0x1c] sm:$0xf]
      %v180 = vld [vmem:[%s165 + $0x20] sm:$0xf]
      %v181 = vld [vmem:[%s165 + $0x24] sm:$0xf]
      %v182 = vld [vmem:[%s165 + $0x28] sm:$0xf]
      %v183 = vld [vmem:[%s1] sm:$0xf]
      %v184 = vld [vmem:[%s1 + $0x4] sm:$0xf]
      %v185 = vld [vmem:[%s1 + $0x8] sm:$0xf]
      %v186 = vld [vmem:[%s1 + $0xc] sm:$0xf]
      %v187 = vld [vmem:[%s1 + $0x10] sm:$0xf]
      %v188 = vld [vmem:[%s1 + $0x14] sm:$0xf]
      %v199 = vunpack.c.l.b16 %v172
      %v200 = vunpack.c.l.b16 %v173
      %v201 = vunpack.c.l.b16 %v174
      %v202 = vunpack.c.l.b16 %v175
      %v203 = vunpack.c.l.b16 %v176
      %v204 = vunpack.c.l.b16 %v177
      %v205 = vunpack.c.l.b16 %v178
      %v206 = vunpack.c.l.b16 %v179
      %v207 = vunpack.c.l.b16 %v180
      %v208 = vunpack.c.l.b16 %v181
      %v209 = vpack.c.b16 %v200, %v199
      %v210 = vpack.c.b16 %v202, %v201
      %v211 = vpack.c.b16 %v204, %v203
      %v212 = vpack.c.b16 %v206, %v205
      %v213 = vpack.c.b16 %v208, %v207
      %vm214 = vsmask.f32 7424
      %v216 = vshrl.u32 %v209, 16
      %v218 = vshll.u32 %v209, 16
      %v220 = vrot.slane %v218, 1
      %v221 = vor.u32 %v216, %v220
      %v223 = vshll.u32 %v210, 16
      %v225 = vrot.slane %v223, 1
      %v226 = vsel %vm214, %v221, %v225
      %v227 = vshrl.u32 %v210, 16
      %v229 = vor.u32 %v227, %v225
      %v231 = vshll.u32 %v211, 16
      %v233 = vrot.slane %v231, 1
      %v234 = vsel %vm214, %v229, %v233
      %v235 = vshrl.u32 %v211, 16
      %v237 = vor.u32 %v235, %v233
      %v239 = vshll.u32 %v212, 16
      %v241 = vrot.slane %v239, 1
      %v242 = vsel %vm214, %v237, %v241
      %v243 = vshrl.u32 %v212, 16
      %v245 = vor.u32 %v243, %v241
      %v247 = vshll.u32 %v213, 16
      %v249 = vrot.slane %v247, 1
      %v250 = vsel %vm214, %v245, %v249
      %v251 = vshrl.u32 %v213, 16
      %v253 = vor.u32 %v251, %v249
      %v256 = vunpack.c.l.b16 %v184
      %v257 = vunpack.c.l.b16 %v185
      %v258 = vpack.c.b16 %v257, %v256
      %v259 = vrot.slane %v258, 2
      %vm260 = vcmask 97280
      %v262 = vsel %vm260, %v226, 0
      %v265 = vsel %vm260, %v234, 0
      %v268 = vsel %vm260, %v242, 0
      %v271 = vsel %vm260, %v250, 0
      %v274 = vsel %vm260, %v253, 0
      %vm276 = vcmask 1045504
      %v278 = vsel %vm276, %v259, 0
      %280 = vmatprep.subr.bf16.mxu0 0
      %281 = vmatpush1.bf16.msra.mxu0 %v278
      %282 = vmatprep.subr.bf16.mxu0 0
      %283 = vmatpush1.bf16.msra.mxu0 0
      %284 = vmatprep.subr.bf16.mxu0 0
      %285 = vmatpush1.bf16.msra.mxu0 0
      %286 = vmatprep.subr.bf16.mxu0 0
      %287 = vmatpush1.bf16.msra.mxu0 0
      %288 = vmatprep.subr.bf16.mxu0 0
      %289 = vmatpush1.bf16.msra.mxu0 0
      %290 = vmatprep.subr.bf16.mxu0 0
      %291 = vmatpush1.bf16.msra.mxu0 0
      %292 = vmatprep.subr.bf16.mxu0 0
      %293 = vmatpush1.bf16.msra.mxu0 0
      %294 = vmatprep.subr.bf16.mxu0 0
      %295 = vmatpush1.bf16.msra.mxu0 0
      %296 = vmatprep.subr.bf16.mxu0 0
      %297 = vmatpush1.bf16.msra.mxu0 0
      %298 = vmatprep.subr.bf16.mxu0 0
      %299 = vmatpush1.bf16.msra.mxu0 0
      %300 = vmatprep.subr.bf16.mxu0 0
      %301 = vmatpush1.bf16.msra.mxu0 0
      %302 = vmatprep.subr.bf16.mxu0 0
      %303 = vmatpush1.bf16.msra.mxu0 0
      %304 = vmatprep.subr.bf16.mxu0 0
      %305 = vmatpush1.bf16.msra.mxu0 0
      %306 = vmatprep.subr.bf16.mxu0 0
      %307 = vmatpush1.bf16.msra.mxu0 0
      %308 = vmatprep.subr.bf16.mxu0 0
      %309 = vmatpush1.bf16.msra.mxu0 0
      %310 = vmatprep.subr.bf16.mxu0 0
      %311 = vmatpush1.bf16.msra.mxu0 0
      %312 = vmatprep.mubr.bf16.mxu0 0
      %313 = vmatmul.mubr.bf16.gmra.mrb[0].mxu0 %v262
      %v314 = vpop.f32.mrb[0].mxu0
      %v315 = vadd.f32 0.0, %v314
      %v316 = vpop.f32.mrb[0].mxu0
      %v317 = vpop.f32.mrb[0].mxu0
      %v318 = vadd.f32 0.0, %v317
      %v319 = vpop.f32.mrb[0].mxu0
      %320 = vmatprep.mubr.bf16.mxu0 0
      %321 = vmatmul.mubr.bf16.gmra.mrb[0].mxu0 %v265
      %v322 = vpop.f32.mrb[0].mxu0
      %v323 = vadd.f32 0.0, %v322
      %v324 = vpop.f32.mrb[0].mxu0
      %v325 = vpop.f32.mrb[0].mxu0
      %v326 = vadd.f32 0.0, %v325
      %v327 = vpop.f32.mrb[0].mxu0
      %328 = vmatprep.mubr.bf16.mxu0 0
      %329 = vmatmul.mubr.bf16.gmra.mrb[0].mxu0 %v268
      %v330 = vpop.f32.mrb[0].mxu0
      %v331 = vadd.f32 0.0, %v330
      %v332 = vpop.f32.mrb[0].mxu0
      %v333 = vpop.f32.mrb[0].mxu0
      %v334 = vadd.f32 0.0, %v333
      %v335 = vpop.f32.mrb[0].mxu0
      %336 = vmatprep.mubr.bf16.mxu0 0
      %337 = vmatmul.mubr.bf16.gmra.mrb[0].mxu0 %v271
      %v338 = vpop.f32.mrb[0].mxu0
      %v339 = vadd.f32 0.0, %v338
      %v340 = vpop.f32.mrb[0].mxu0
      %v341 = vpop.f32.mrb[0].mxu0
      %v342 = vadd.f32 0.0, %v341
      %v343 = vpop.f32.mrb[0].mxu0
      %344 = vmatprep.mubr.bf16.mxu0 0
      %345 = vmatmul.mubr.bf16.gmra.mrb[0].mxu0 %v274
      %v346 = vpop.f32.mrb[0].mxu0
      %v347 = vadd.f32 0.0, %v346
      %v348 = vpop.f32.mrb[0].mxu0
      %v349 = vpop.f32.mrb[0].mxu0
      %v350 = vpop.f32.mrb[0].mxu0
      %351 = vdwg.mxu0
      %v352 = vpack.c.b16 %v207, %v207
      %v354 = vunpack.c.l.b16 %v183
      %v355 = vpack.c.b16 %v256, %v354
      %v356 = vsel %vm260, %v209, 0
      %v358 = vsel %vm260, %v210, 0
      %v360 = vsel %vm260, %v211, 0
      %v362 = vsel %vm260, %v212, 0
      %v365 = vsel %vm260, %v352, 0
      %v368 = vsel %vm276, %v355, 0
      %370 = vmatprep.subr.bf16.mxu0 0
      %371 = vmatpush1.bf16.msra.mxu0 %v368
      %372 = vmatprep.subr.bf16.mxu0 0
      %373 = vmatpush1.bf16.msra.mxu0 0
      %374 = vmatprep.subr.bf16.mxu0 0
      %375 = vmatpush1.bf16.msra.mxu0 0
      %376 = vmatprep.subr.bf16.mxu0 0
      %377 = vmatpush1.bf16.msra.mxu0 0
      %378 = vmatprep.subr.bf16.mxu0 0
      %379 = vmatpush1.bf16.msra.mxu0 0
      %380 = vmatprep.subr.bf16.mxu0 0
      %381 = vmatpush1.bf16.msra.mxu0 0
      %382 = vmatprep.subr.bf16.mxu0 0
      %383 = vmatpush1.bf16.msra.mxu0 0
      %384 = vmatprep.subr.bf16.mxu0 0
      %385 = vmatpush1.bf16.msra.mxu0 0
      %386 = vmatprep.subr.bf16.mxu0 0
      %387 = vmatpush1.bf16.msra.mxu0 0
      %388 = vmatprep.subr.bf16.mxu0 0
      %389 = vmatpush1.bf16.msra.mxu0 0
      %390 = vmatprep.subr.bf16.mxu0 0
      %391 = vmatpush1.bf16.msra.mxu0 0
      %392 = vmatprep.subr.bf16.mxu0 0
      %393 = vmatpush1.bf16.msra.mxu0 0
      %394 = vmatprep.subr.bf16.mxu0 0
      %395 = vmatpush1.bf16.msra.mxu0 0
      %396 = vmatprep.subr.bf16.mxu0 0
      %397 = vmatpush1.bf16.msra.mxu0 0
      %398 = vmatprep.subr.bf16.mxu0 0
      %399 = vmatpush1.bf16.msra.mxu0 0
      %400 = vmatprep.subr.bf16.mxu0 0
      %401 = vmatpush1.bf16.msra.mxu0 0
      %402 = vmatprep.mubr.bf16.mxu0 0
      %403 = vmatmul.mubr.bf16.gmra.mrb[0].mxu0 %v356
      %v404 = vpop.f32.mrb[0].mxu0
      %v405 = vadd.f32 %v315, %v404
      %v406 = vpop.f32.mrb[0].mxu0
      %v407 = vpop.f32.mrb[0].mxu0
      %v408 = vadd.f32 %v318, %v407
      %v409 = vpop.f32.mrb[0].mxu0
      %410 = vmatprep.mubr.bf16.mxu0 0
      %411 = vmatmul.mubr.bf16.gmra.mrb[0].mxu0 %v358
      %v412 = vpop.f32.mrb[0].mxu0
      %v413 = vadd.f32 %v323, %v412
      %v414 = vpop.f32.mrb[0].mxu0
      %v415 = vpop.f32.mrb[0].mxu0
      %v416 = vadd.f32 %v326, %v415
      %v417 = vpop.f32.mrb[0].mxu0
      %418 = vmatprep.mubr.bf16.mxu0 0
      %419 = vmatmul.mubr.bf16.gmra.mrb[0].mxu0 %v360
      %v420 = vpop.f32.mrb[0].mxu0
      %v421 = vadd.f32 %v331, %v420
      %v422 = vpop.f32.mrb[0].mxu0
      %v423 = vpop.f32.mrb[0].mxu0
      %v424 = vadd.f32 %v334, %v423
      %v425 = vpop.f32.mrb[0].mxu0
      %426 = vmatprep.mubr.bf16.mxu0 0
      %427 = vmatmul.mubr.bf16.gmra.mrb[0].mxu0 %v362
      %v428 = vpop.f32.mrb[0].mxu0
      %v429 = vadd.f32 %v339, %v428
      %v430 = vpop.f32.mrb[0].mxu0
      %v431 = vpop.f32.mrb[0].mxu0
      %v432 = vadd.f32 %v342, %v431
      %v433 = vpop.f32.mrb[0].mxu0
      %434 = vmatprep.mubr.bf16.mxu0 0
      %435 = vmatmul.mubr.bf16.gmra.mrb[0].mxu0 %v365
      %v436 = vpop.f32.mrb[0].mxu0
      %v437 = vadd.f32 %v347, %v436
      %v438 = vpop.f32.mrb[0].mxu0
      %v439 = vpop.f32.mrb[0].mxu0
      %v440 = vpop.f32.mrb[0].mxu0
      %441 = vdwg.mxu0
      %v443 = vunpack.c.l.b16 %v182
      %v444 = vpack.c.b16 %v201, %v200
      %v445 = vpack.c.b16 %v203, %v202
      %v446 = vpack.c.b16 %v205, %v204
      %v447 = vpack.c.b16 %v207, %v206
      %v448 = vpack.c.b16 %v443, %v208
      %v450 = vshrl.u32 %v444, 16
      %v452 = vshll.u32 %v444, 16
      %v454 = vrot.slane %v452, 1
      %v455 = vor.u32 %v450, %v454
      %v457 = vshll.u32 %v445, 16
      %v459 = vrot.slane %v457, 1
      %v460 = vsel %vm214, %v455, %v459
      %v461 = vshrl.u32 %v445, 16
      %v463 = vor.u32 %v461, %v459
      %v465 = vshll.u32 %v446, 16
      %v467 = vrot.slane %v465, 1
      %v468 = vsel %vm214, %v463, %v467
      %v469 = vshrl.u32 %v446, 16
      %v471 = vor.u32 %v469, %v467
      %v473 = vshll.u32 %v447, 16
      %v475 = vrot.slane %v473, 1
      %v476 = vsel %vm214, %v471, %v475
      %v477 = vshrl.u32 %v447, 16
      %v479 = vor.u32 %v477, %v475
      %v481 = vshll.u32 %v448, 16
      %v483 = vrot.slane %v481, 1
      %v484 = vsel %vm214, %v479, %v483
      %v485 = vshrl.u32 %v448, 16
      %v487 = vor.u32 %v485, %v483
      %v490 = vunpack.c.l.b16 %v186
      %v491 = vunpack.c.l.b16 %v187
      %v492 = vpack.c.b16 %v491, %v490
      %v494 = vsel %vm260, %v460, 0
      %v497 = vsel %vm260, %v468, 0
      %v500 = vsel %vm260, %v476, 0
      %v503 = vsel %vm260, %v484, 0
      %v506 = vsel %vm260, %v487, 0
      %v509 = vsel %vm276, %v492, 0
      %511 = vmatprep.subr.bf16.mxu0 0
      %512 = vmatpush1.bf16.msra.mxu0 %v509
      %513 = vmatprep.subr.bf16.mxu0 0
      %514 = vmatpush1.bf16.msra.mxu0 0
      %515 = vmatprep.subr.bf16.mxu0 0
      %516 = vmatpush1.bf16.msra.mxu0 0
      %517 = vmatprep.subr.bf16.mxu0 0
      %518 = vmatpush1.bf16.msra.mxu0 0
      %519 = vmatprep.subr.bf16.mxu0 0
      %520 = vmatpush1.bf16.msra.mxu0 0
      %521 = vmatprep.subr.bf16.mxu0 0
      %522 = vmatpush1.bf16.msra.mxu0 0
      %523 = vmatprep.subr.bf16.mxu0 0
      %524 = vmatpush1.bf16.msra.mxu0 0
      %525 = vmatprep.subr.bf16.mxu0 0
      %526 = vmatpush1.bf16.msra.mxu0 0
      %527 = vmatprep.subr.bf16.mxu0 0
      %528 = vmatpush1.bf16.msra.mxu0 0
      %529 = vmatprep.subr.bf16.mxu0 0
      %530 = vmatpush1.bf16.msra.mxu0 0
      %531 = vmatprep.subr.bf16.mxu0 0
      %532 = vmatpush1.bf16.msra.mxu0 0
      %533 = vmatprep.subr.bf16.mxu0 0
      %534 = vmatpush1.bf16.msra.mxu0 0
      %535 = vmatprep.subr.bf16.mxu0 0
      %536 = vmatpush1.bf16.msra.mxu0 0
      %537 = vmatprep.subr.bf16.mxu0 0
      %538 = vmatpush1.bf16.msra.mxu0 0
      %539 = vmatprep.subr.bf16.mxu0 0
      %540 = vmatpush1.bf16.msra.mxu0 0
      %541 = vmatprep.subr.bf16.mxu0 0
      %542 = vmatpush1.bf16.msra.mxu0 0
      %543 = vmatprep.mubr.bf16.mxu0 0
      %544 = vmatmul.mubr.bf16.gmra.mrb[0].mxu0 %v494
      %v545 = vpop.f32.mrb[0].mxu0
      %v546 = vadd.f32 0.0, %v545
      %v547 = vpop.f32.mrb[0].mxu0
      %v548 = vpop.f32.mrb[0].mxu0
      %v549 = vadd.f32 0.0, %v548
      %v550 = vpop.f32.mrb[0].mxu0
      %551 = vmatprep.mubr.bf16.mxu0 0
      %552 = vmatmul.mubr.bf16.gmra.mrb[0].mxu0 %v497
      %v553 = vpop.f32.mrb[0].mxu0
      %v554 = vadd.f32 0.0, %v553
      %v555 = vpop.f32.mrb[0].mxu0
      %v556 = vpop.f32.mrb[0].mxu0
      %v557 = vadd.f32 0.0, %v556
      %v558 = vpop.f32.mrb[0].mxu0
      %559 = vmatprep.mubr.bf16.mxu0 0
      %560 = vmatmul.mubr.bf16.gmra.mrb[0].mxu0 %v500
      %v561 = vpop.f32.mrb[0].mxu0
      %v562 = vadd.f32 0.0, %v561
      %v563 = vpop.f32.mrb[0].mxu0
      %v564 = vpop.f32.mrb[0].mxu0
      %v565 = vadd.f32 0.0, %v564
      %v566 = vpop.f32.mrb[0].mxu0
      %567 = vmatprep.mubr.bf16.mxu0 0
      %568 = vmatmul.mubr.bf16.gmra.mrb[0].mxu0 %v503
      %v569 = vpop.f32.mrb[0].mxu0
      %v570 = vadd.f32 0.0, %v569
      %v571 = vpop.f32.mrb[0].mxu0
      %v572 = vpop.f32.mrb[0].mxu0
      %v573 = vadd.f32 0.0, %v572
      %v574 = vpop.f32.mrb[0].mxu0
      %575 = vmatprep.mubr.bf16.mxu0 0
      %576 = vmatmul.mubr.bf16.gmra.mrb[0].mxu0 %v506
      %v577 = vpop.f32.mrb[0].mxu0
      %v578 = vadd.f32 0.0, %v577
      %v579 = vpop.f32.mrb[0].mxu0
      %v580 = vpop.f32.mrb[0].mxu0
      %v581 = vpop.f32.mrb[0].mxu0
      %582 = vdwg.mxu0
      %v583 = vadd.f32 %v405, %v546
      %v584 = vadd.f32 %v408, %v549
      %v585 = vadd.f32 %v413, %v554
      %v586 = vadd.f32 %v416, %v557
      %v587 = vadd.f32 %v421, %v562
      %v588 = vadd.f32 %v424, %v565
      %v589 = vadd.f32 %v429, %v570
      %v590 = vadd.f32 %v432, %v573
      %v591 = vadd.f32 %v437, %v578
      %vm592 = vcmask 1046528
      %v593 = vrot.slane %v444, 1
      %v594 = vrot.slane %v445, 1
      %v595 = vsel %vm592, %v593, %v594
      %v596 = vrot.slane %v446, 1
      %v597 = vsel %vm592, %v594, %v596
      %v598 = vrot.slane %v447, 1
      %v599 = vsel %vm592, %v596, %v598
      %v600 = vrot.slane %v448, 1
      %v601 = vsel %vm592, %v598, %v600
      %v603 = vunpack.c.l.b16 %v188
      %v604 = vpack.c.b16 %v603, %v491
      %v605 = vrot.slane %v604, 2
      %v607 = vsel %vm260, %v595, 0
      %v610 = vsel %vm260, %v597, 0
      %v613 = vsel %vm260, %v599, 0
      %v616 = vsel %vm260, %v601, 0
      %v619 = vsel %vm260, %v600, 0
      %v622 = vsel %vm276, %v605, 0
      %624 = vmatprep.subr.bf16.mxu0 0
      %625 = vmatpush1.bf16.msra.mxu0 %v622
      %626 = vmatprep.subr.bf16.mxu0 0
      %627 = vmatpush1.bf16.msra.mxu0 0
      %628 = vmatprep.subr.bf16.mxu0 0
      %629 = vmatpush1.bf16.msra.mxu0 0
      %630 = vmatprep.subr.bf16.mxu0 0
      %631 = vmatpush1.bf16.msra.mxu0 0
      %632 = vmatprep.subr.bf16.mxu0 0
      %633 = vmatpush1.bf16.msra.mxu0 0
      %634 = vmatprep.subr.bf16.mxu0 0
      %635 = vmatpush1.bf16.msra.mxu0 0
      %636 = vmatprep.subr.bf16.mxu0 0
      %637 = vmatpush1.bf16.msra.mxu0 0
      %638 = vmatprep.subr.bf16.mxu0 0
      %639 = vmatpush1.bf16.msra.mxu0 0
      %640 = vmatprep.subr.bf16.mxu0 0
      %641 = vmatpush1.bf16.msra.mxu0 0
      %642 = vmatprep.subr.bf16.mxu0 0
      %643 = vmatpush1.bf16.msra.mxu0 0
      %644 = vmatprep.subr.bf16.mxu0 0
      %645 = vmatpush1.bf16.msra.mxu0 0
      %646 = vmatprep.subr.bf16.mxu0 0
      %647 = vmatpush1.bf16.msra.mxu0 0
      %648 = vmatprep.subr.bf16.mxu0 0
      %649 = vmatpush1.bf16.msra.mxu0 0
      %650 = vmatprep.subr.bf16.mxu0 0
      %651 = vmatpush1.bf16.msra.mxu0 0
      %652 = vmatprep.subr.bf16.mxu0 0
      %653 = vmatpush1.bf16.msra.mxu0 0
      %654 = vmatprep.subr.bf16.mxu0 0
      %655 = vmatpush1.bf16.msra.mxu0 0
      %656 = vmatprep.mubr.bf16.mxu0 0
      %657 = vmatmul.mubr.bf16.gmra.mrb[0].mxu0 %v607
      %v658 = vpop.f32.mrb[0].mxu0
      %v659 = vadd.f32 0.0, %v658
      %v660 = vpop.f32.mrb[0].mxu0
      %v661 = vpop.f32.mrb[0].mxu0
      %v662 = vadd.f32 0.0, %v661
      %v663 = vpop.f32.mrb[0].mxu0
      %664 = vmatprep.mubr.bf16.mxu0 0
      %665 = vmatmul.mubr.bf16.gmra.mrb[0].mxu0 %v610
      %v666 = vpop.f32.mrb[0].mxu0
      %v667 = vadd.f32 0.0, %v666
      %v668 = vpop.f32.mrb[0].mxu0
      %v669 = vpop.f32.mrb[0].mxu0
      %v670 = vadd.f32 0.0, %v669
      %v671 = vpop.f32.mrb[0].mxu0
      %672 = vmatprep.mubr.bf16.mxu0 0
      %673 = vmatmul.mubr.bf16.gmra.mrb[0].mxu0 %v613
      %v674 = vpop.f32.mrb[0].mxu0
      %v675 = vadd.f32 0.0, %v674
      %v676 = vpop.f32.mrb[0].mxu0
      %v677 = vpop.f32.mrb[0].mxu0
      %v678 = vadd.f32 0.0, %v677
      %v679 = vpop.f32.mrb[0].mxu0
      %680 = vmatprep.mubr.bf16.mxu0 0
      %681 = vmatmul.mubr.bf16.gmra.mrb[0].mxu0 %v616
      %v682 = vpop.f32.mrb[0].mxu0
      %v683 = vadd.f32 0.0, %v682
      %v684 = vpop.f32.mrb[0].mxu0
      %v685 = vpop.f32.mrb[0].mxu0
      %v686 = vadd.f32 0.0, %v685
      %v687 = vpop.f32.mrb[0].mxu0
      %688 = vmatprep.mubr.bf16.mxu0 0
      %689 = vmatmul.mubr.bf16.gmra.mrb[0].mxu0 %v619
      %v690 = vpop.f32.mrb[0].mxu0
      %v691 = vadd.f32 0.0, %v690
      %v692 = vpop.f32.mrb[0].mxu0
      %v693 = vpop.f32.mrb[0].mxu0
      %v694 = vpop.f32.mrb[0].mxu0
      %695 = vdwg.mxu0
      %v696 = vadd.f32 %v583, %v659
      %v697 = vadd.f32 %v584, %v662
      %v698 = vadd.f32 %v585, %v667
      %v699 = vadd.f32 %v586, %v670
      %v700 = vadd.f32 %v587, %v675
      %v701 = vadd.f32 %v588, %v678
      %v702 = vadd.f32 %v589, %v683
      %v703 = vadd.f32 %v590, %v686
      %v704 = vadd.f32 %v591, %v691
      %v705 = vld [vmem:[%s2] sm:$0x1]
      %v707 = vlaneseq
      %v708 = vshrl.u32 %v707, 7
      %v709 = vsub.s32 0, %v708
      %v710 = vrot.slane %v705, %v709
      %v712 = vadd.f32 %v696, %v710
      %v713 = vadd.f32 %v697, %v710
      %v714 = vadd.f32 %v698, %v710
      %v715 = vadd.f32 %v699, %v710
      %v716 = vadd.f32 %v700, %v710
      %v717 = vadd.f32 %v701, %v710
      %v718 = vadd.f32 %v702, %v710
      %v719 = vadd.f32 %v703, %v710
      %v720 = vadd.f32 %v704, %v710
      %v721 = vmax.f32 %v712, 0.0
      %v722 = vmax.f32 %v713, 0.0
      %v723 = vmax.f32 %v714, 0.0
      %v724 = vmax.f32 %v715, 0.0
      %v725 = vmax.f32 %v716, 0.0
      %v726 = vmax.f32 %v717, 0.0
      %v727 = vmax.f32 %v718, 0.0
      %v728 = vmax.f32 %v719, 0.0
      %v729 = vmax.f32 %v720, 0.0
      %vm730 = vcmask 64512
      %731 = vst.msk [vmem:[%s170] sm:$0xff] %vm730, %v721
      %732 = vst.msk [vmem:[%s170 + $0x8] sm:$0xff] %vm730, %v722
      %733 = vst.msk [vmem:[%s170 + $0x10] sm:$0xff] %vm730, %v723
      %734 = vst.msk [vmem:[%s170 + $0x18] sm:$0xff] %vm730, %v724
      %735 = vst.msk [vmem:[%s170 + $0x20] sm:$0xff] %vm730, %v725
      %736 = vst.msk [vmem:[%s170 + $0x28] sm:$0xff] %vm730, %v726
      %737 = vst.msk [vmem:[%s170 + $0x30] sm:$0xff] %vm730, %v727
      %738 = vst.msk [vmem:[%s170 + $0x38] sm:$0xff] %vm730, %v728
      %739 = vst.msk [vmem:[%s170 + $0x40] sm:$0xff] %vm730, %v729
      %p740 = scmp.lt.s32.totalorder %s14, 1
      %s741 = scalar_select %p740, %s14, 1
      %s742 = smul.addr %s741, 9
      %s743 = smul.addr %s742, 8
      %s744 = scalar_lea.vmem %s3, %s743
      // Predicated region
      $region33: #{tpu_custom_call.1} parent=31 // pred_check
        %p745 = pneg %p100
      $region34: #{tpu_custom_call.1} parent=31 // pred_check_branch
        %747 = sbr.rel (%p745) target = $region36
      $region35: #{tpu_custom_call.1} parent=31 // pred_region
        _
      $region36: #{tpu_custom_call.1} parent=31 // pred_fallthru
        _
    $region32: #{tpu_custom_call.1} parent=5 // pred_fallthru
      _
    %p748 = scmp.le.s32.totalorder 2, %s9
    // Predicated region
    $region37: #{tpu_custom_call.1} parent=5 // pred_check
      %p749 = pneg %p748
    $region38: #{tpu_custom_call.1} parent=5 // pred_check_branch
      %751 = sbr.rel (%p749) target = $region40
    $region39: #{tpu_custom_call.1} parent=5 // pred_region
      %s752 = ssub.s32 %s9, 2
      // Predicated region
      $region41: #{tpu_custom_call.1} parent=39 // pred_check
        %p753 = pneg %p106
      $region42: #{tpu_custom_call.1} parent=39 // pred_check_branch
        %755 = sbr.rel (%p753) target = $region44
      $region43: #{tpu_custom_call.1} parent=39 // pred_region
        %p756 = scmp.lt.s32.totalorder %s15, 1
        %s757 = scalar_select %p756, %s15, 1
        %s758 = smul.addr %s757, 9
        %s759 = smul.addr %s758, 8
        %s760 = scalar_lea.vmem %s3, %s759
      $region44: #{tpu_custom_call.1} parent=39 // pred_fallthru
        _
    $region40: #{tpu_custom_call.1} parent=5 // pred_fallthru
      _
  $region6: #{tpu_custom_call.1} parent=0 // loop_footer
    %s13 = sadd.s32 1, %s9
  $region7: #{tpu_custom_call.1} parent=0 // loop_footer_branch
    %8 = sbr.rel target = $region3
  $region8: #{tpu_custom_call.1} parent=0 // loop_exit
    _

</llo_original>
